<compile_context>
chip_gen: v5e
topology: v5e:2x2
jax: 0.10.0
libtpu: 0.0.40
codegen_flags: <defaults>
</compile_context>

<pallas_src>
import jax
import jax.numpy as jnp
from jax.experimental import pallas as pl
from jax.experimental.pallas import tpu as pltpu

MODEL_DIM = 128
FACTOR = 2
LEAK = 0.2
NORM_EPS = 1e-8


def _leaky_relu(v):
    # 0 < LEAK < 1  =>  max(v, LEAK*v) == leaky_relu(v); single VPU max.
    return jnp.maximum(v, LEAK * v)


def branch_kernel(x_ref, w1_ref, b1_ref, w2_ref, b2_ref, w3_ref, b3_ref,
                  tw1_ref, tb1_ref, tw2_ref, tb2_ref, tw3_ref, tb3_ref,
                  y_ref, t_ref):
    bt, seq, d = x_ref.shape            # B_TILE examples per grid step
    m = bt * seq
    n = seq * d                         # elements per example

    # ---------- ExampleNorm (per example, f32, single sum/sumsq pass) ----------
    x = x_ref[...]                                                  # (bt, seq, d)
    s = jnp.sum(jnp.sum(x, axis=2, keepdims=True), axis=1, keepdims=True)
    sq = jnp.sum(jnp.sum(x * x, axis=2, keepdims=True), axis=1, keepdims=True)
    mean = s / n
    var = jnp.maximum((sq - n * mean * mean) / (n - 1), 0.0)        # unbiased
    inv = pl.reciprocal(jnp.sqrt(var) + NORM_EPS, approx=True)      # EUP, ~free
    xn = (x * inv).reshape(m, d)        # leading-dim collapse only (layout no-op)

    # ---------- transform: (Linear + LeakyReLU) x2, Linear -> (m, 2d) ----------
    h = _leaky_relu(jnp.dot(xn.astype(jnp.bfloat16), w1_ref[...],
                            preferred_element_type=jnp.float32) + b1_ref[...])
    h = _leaky_relu(jnp.dot(h.astype(jnp.bfloat16), w2_ref[...],
                            preferred_element_type=jnp.float32) + b2_ref[...])
    y = jnp.dot(h.astype(jnp.bfloat16), w3_ref[...],
                preferred_element_type=jnp.float32) + b3_ref[...]   # (m, 2d) f32
    y_ref[...] = y                      # lane-dense (m, 256) store

    # ---------- to_time on x_out rows, still in VMEM ----------
    # x_out row 2r   == y[r, :d]  -> ycat row r
    # x_out row 2r+1 == y[r, d:]  -> ycat row m + r
    ycat = jnp.concatenate([y[:, :d], y[:, d:]], axis=0).astype(jnp.bfloat16)
    g = _leaky_relu(jnp.dot(ycat, tw1_ref[...],
                            preferred_element_type=jnp.float32) + tb1_ref[...])
    g = _leaky_relu(jnp.dot(g.astype(jnp.bfloat16), tw2_ref[...],
                            preferred_element_type=jnp.float32) + tb2_ref[...])
    # out_channels == 1: VPU multiply + lane (XLU) reduction instead of an N=1 matmul.
    logits = jnp.sum(g * tw3_ref[...], axis=-1, keepdims=True) + tb3_ref[...]
    t = jax.nn.sigmoid(logits) * FACTOR                             # (2m, 1) f32
    # Pack as (m, 2): row-major flatten == interleaved x_out row order.
    t_ref[...] = jnp.concatenate([t[:m], t[m:]], axis=1)


def _rep_spec(shape):
    # Whole (small) parameter array resident in VMEM; same block every step.
    return pl.BlockSpec(shape, lambda b: (0,) * len(shape))


def _choose_num_blocks(batch, seq):
    """Divisor of batch: >= 2 grid steps when possible (megacore), ~1024 rows/step."""
    best_nb, best_score = 1, None
    for nb in range(1, batch + 1):
        if batch % nb:
            continue
        rows = (batch // nb) * seq
        if nb > 1 and rows % 8:
            continue                         # keep output blocks sublane-aligned
        score = abs(rows - 1024) + (0 if nb >= 2 else 4096) + 8 * nb
        if best_score is None or score < best_score:
            best_nb, best_score = nb, score
    return best_nb


def branch_forward(x, params, base_time=None):
    (w1, b1, w2, b2, w3, b3, tw1, tb1, tw2, tb2, tw3, tb3) = params
    batch = x.shape[0]
    x = x.reshape(batch, -1, MODEL_DIM).astype(jnp.float32)
    seq = x.shape[1]
    d = MODEL_DIM
    assert seq * d > 1  # unbiased std divides by (n - 1)

    num_blocks = _choose_num_blocks(batch, seq)
    b_tile = batch // num_blocks
    m = b_tile * seq
    rows = batch * seq
    seq2 = 2 * seq

    # bf16 weights for the MXU; biases and norm math stay f32.
    w1b, w2b, w3b = (w.astype(jnp.bfloat16) for w in (w1, w2, w3))
    tw1b, tw2b = tw1.astype(jnp.bfloat16), tw2.astype(jnp.bfloat16)
    tw3row = tw3.reshape(1, d).astype(jnp.float32)      # used on the VPU

    cost = pl.CostEstimate(
        flops=16 * rows * d * d + 4 * rows * d,
        transcendentals=2 * rows + batch,
        bytes_accessed=(4 * rows * d            # x in
                        + 4 * rows * 2 * d      # y out
                        + 4 * 2 * rows          # t out
                        + 2 * 6 * d * d         # bf16 weights
                        + 4 * 8 * d))           # biases

    y2d, t2d = pl.pallas_call(
        branch_kernel,
        out_shape=(jax.ShapeDtypeStruct((rows, 2 * d), jnp.float32),
                   jax.ShapeDtypeStruct((rows, 2), jnp.float32)),
        grid=(num_blocks,),
        in_specs=[
            pl.BlockSpec((b_tile, seq, d), lambda b: (b, 0, 0)),
            _rep_spec(w1b.shape), _rep_spec(b1.shape),
            _rep_spec(w2b.shape), _rep_spec(b2.shape),
            _rep_spec(w3b.shape), _rep_spec(b3.shape),
            _rep_spec(tw1b.shape), _rep_spec(tb1.shape),
            _rep_spec(tw2b.shape), _rep_spec(tb2.shape),
            _rep_spec(tw3row.shape), _rep_spec(tb3.shape),
        ],
        out_specs=[pl.BlockSpec((m, 2 * d), lambda b: (b, 0)),
                   pl.BlockSpec((m, 2), lambda b: (b, 0))],
        compiler_params=pltpu.CompilerParams(
            dimension_semantics=("parallel",)),
        cost_estimate=cost,
    )(x, w1b, b1, w2b, b2, w3b, b3, tw1b, tb1, tw2b, tb2, tw3row, tb3)

    # Contiguous views back to the PyTorch shapes (the intermediate itself never
    # made an extra HBM round trip inside the kernel).
    x_out = y2d.reshape(batch, seq2, d)
    time = t2d.reshape(batch, seq2, 1)

    if base_time is not None:
        # torch .repeat(1, n, 1) == tile along the seq axis.
        bt_ = base_time.reshape(batch, -1, 1)
        time = time + jnp.tile(bt_, (1, seq2 // bt_.shape[1], 1))
    return time, x_out


def init_params(key):
    # weight_init=0.1 -> uniform(-0.1, 0.1) for all params (synthetic init).
    def uni(k, shape):
        return jax.random.uniform(k, shape, jnp.float32, -0.1, 0.1)

    ks = jax.random.split(key, 12)
    w1, b1 = uni(ks[0], (MODEL_DIM, MODEL_DIM)), uni(ks[1], (1, MODEL_DIM))
    w2, b2 = uni(ks[2], (MODEL_DIM, MODEL_DIM)), uni(ks[3], (1, MODEL_DIM))
    w3, b3 = (uni(ks[4], (MODEL_DIM, MODEL_DIM * FACTOR)),
              uni(ks[5], (1, MODEL_DIM * FACTOR)))
    tw1, tb1 = uni(ks[6], (MODEL_DIM, MODEL_DIM)), uni(ks[7], (1, MODEL_DIM))
    tw2, tb2 = uni(ks[8], (MODEL_DIM, MODEL_DIM)), uni(ks[9], (1, MODEL_DIM))
    tw3, tb3 = uni(ks[10], (MODEL_DIM, 1)), uni(ks[11], (1, 1))
    return (w1, b1, w2, b2, w3, b3, tw1, tb1, tw2, tb2, tw3, tb3)


if __name__ == "__main__":
    key = jax.random.PRNGKey(0)
    pkey, xkey = jax.random.split(key)
    params = init_params(pkey)

    batch, seq = 2, 8
    x = jax.random.normal(xkey, (batch, seq, MODEL_DIM), jnp.float32)

    time, x_out = jax.jit(branch_forward)(x, params)
    jax.block_until_ready((time, x_out))

    assert time.shape == (batch, seq * FACTOR, 1), time.shape
    assert x_out.shape == (batch, seq * FACTOR, MODEL_DIM), x_out.shape
    assert bool(jnp.all(jnp.isfinite(time))) and bool(jnp.all(jnp.isfinite(x_out)))
    # sigmoid(.) * factor must lie in (0, factor)
    assert bool(jnp.all(time > 0)) and bool(jnp.all(time < FACTOR))
    print("KERNEL_OK")
</pallas_src>

<mosaic_0001>
module attributes {stable_mosaic.version = 11 : i64} {
  func.func @branch_kernel(%arg0: i32, %arg1: memref<1x8x128xf32, #tpu.memory_space<vmem>>, %arg2: memref<128x128xbf16, #tpu.memory_space<vmem>>, %arg3: memref<1x128xf32, #tpu.memory_space<vmem>>, %arg4: memref<128x128xbf16, #tpu.memory_space<vmem>>, %arg5: memref<1x128xf32, #tpu.memory_space<vmem>>, %arg6: memref<128x256xbf16, #tpu.memory_space<vmem>>, %arg7: memref<1x256xf32, #tpu.memory_space<vmem>>, %arg8: memref<128x128xbf16, #tpu.memory_space<vmem>>, %arg9: memref<1x128xf32, #tpu.memory_space<vmem>>, %arg10: memref<128x128xbf16, #tpu.memory_space<vmem>>, %arg11: memref<1x128xf32, #tpu.memory_space<vmem>>, %arg12: memref<1x128xf32, #tpu.memory_space<vmem>>, %arg13: memref<1x1xf32, #tpu.memory_space<vmem>>, %arg14: memref<8x256xf32, #tpu.memory_space<vmem>>, %arg15: memref<8x2xf32, #tpu.memory_space<vmem>>) attributes {dimension_semantics = [#tpu.dimension_semantics<parallel>], iteration_bounds = array<i64: 2>, scalar_prefetch = 0 : i64, scratch_operands = 0 : i64, tpu.core_type = #tpu.core_type<tc>, window_params = [{transform_indices = @transform_0, window_bounds = array<i64: 1, 8, 128>}, {pipeline_mode = #tpu.pipeline_mode<synchronous>, transform_indices = @transform_1, window_bounds = array<i64: 128, 128>}, {pipeline_mode = #tpu.pipeline_mode<synchronous>, transform_indices = @transform_2, window_bounds = array<i64: 1, 128>}, {pipeline_mode = #tpu.pipeline_mode<synchronous>, transform_indices = @transform_3, window_bounds = array<i64: 128, 128>}, {pipeline_mode = #tpu.pipeline_mode<synchronous>, transform_indices = @transform_4, window_bounds = array<i64: 1, 128>}, {pipeline_mode = #tpu.pipeline_mode<synchronous>, transform_indices = @transform_5, window_bounds = array<i64: 128, 256>}, {pipeline_mode = #tpu.pipeline_mode<synchronous>, transform_indices = @transform_6, window_bounds = array<i64: 1, 256>}, {pipeline_mode = #tpu.pipeline_mode<synchronous>, transform_indices = @transform_7, window_bounds = array<i64: 128, 128>}, {pipeline_mode = #tpu.pipeline_mode<synchronous>, transform_indices = @transform_8, window_bounds = array<i64: 1, 128>}, {pipeline_mode = #tpu.pipeline_mode<synchronous>, transform_indices = @transform_9, window_bounds = array<i64: 128, 128>}, {pipeline_mode = #tpu.pipeline_mode<synchronous>, transform_indices = @transform_10, window_bounds = array<i64: 1, 128>}, {pipeline_mode = #tpu.pipeline_mode<synchronous>, transform_indices = @transform_11, window_bounds = array<i64: 1, 128>}, {pipeline_mode = #tpu.pipeline_mode<synchronous>, transform_indices = @transform_12, window_bounds = array<i64: 1, 1>}, {transform_indices = @transform_13, window_bounds = array<i64: 8, 256>}, {transform_indices = @transform_14, window_bounds = array<i64: 8, 2>}]} {
    %c0 = arith.constant 0 : index
    %c0_0 = arith.constant 0 : index
    %c0_1 = arith.constant 0 : index
    %0 = vector.load %arg1[%c0, %c0_0, %c0_1] : memref<1x8x128xf32, #tpu.memory_space<vmem>>, vector<1x8x128xf32>
    %cst = arith.constant dense<0.000000e+00> : vector<1x8xf32>
    %1 = vector.multi_reduction <add>, %0, %cst [2] : vector<1x8x128xf32> to vector<1x8xf32>
    %2 = vector.shape_cast %1 : vector<1x8xf32> to vector<1x8x1xf32>
    %cst_2 = arith.constant dense<0.000000e+00> : vector<1x1xf32>
    %3 = vector.multi_reduction <add>, %2, %cst_2 [1] : vector<1x8x1xf32> to vector<1x1xf32>
    %4 = vector.shape_cast %3 : vector<1x1xf32> to vector<1x1x1xf32>
    %5 = arith.mulf %0, %0 : vector<1x8x128xf32>
    %cst_3 = arith.constant dense<0.000000e+00> : vector<1x8xf32>
    %6 = vector.multi_reduction <add>, %5, %cst_3 [2] : vector<1x8x128xf32> to vector<1x8xf32>
    %7 = vector.shape_cast %6 : vector<1x8xf32> to vector<1x8x1xf32>
    %cst_4 = arith.constant dense<0.000000e+00> : vector<1x1xf32>
    %8 = vector.multi_reduction <add>, %7, %cst_4 [1] : vector<1x8x1xf32> to vector<1x1xf32>
    %9 = vector.shape_cast %8 : vector<1x1xf32> to vector<1x1x1xf32>
    %cst_5 = arith.constant 1.024000e+03 : f32
    %10 = vector.broadcast %cst_5 : f32 to vector<1x1x1xf32>
    %11 = arith.divf %4, %10 : vector<1x1x1xf32>
    %cst_6 = arith.constant 1.024000e+03 : f32
    %12 = vector.broadcast %cst_6 : f32 to vector<1x1x1xf32>
    %13 = arith.mulf %12, %11 : vector<1x1x1xf32>
    %14 = arith.mulf %13, %11 : vector<1x1x1xf32>
    %15 = arith.subf %9, %14 : vector<1x1x1xf32>
    %cst_7 = arith.constant 1.023000e+03 : f32
    %16 = vector.broadcast %cst_7 : f32 to vector<1x1x1xf32>
    %17 = arith.divf %15, %16 : vector<1x1x1xf32>
    %cst_8 = arith.constant 0.000000e+00 : f32
    %18 = vector.broadcast %cst_8 : f32 to vector<1x1x1xf32>
    %19 = arith.maximumf %17, %18 : vector<1x1x1xf32>
    %20 = math.sqrt %19 : vector<1x1x1xf32>
    %cst_9 = arith.constant 9.99999993E-9 : f32
    %21 = vector.broadcast %cst_9 : f32 to vector<1x1x1xf32>
    %22 = arith.addf %20, %21 : vector<1x1x1xf32>
    %23 = tpu.reciprocal %22 {approx = true} : vector<1x1x1xf32> -> vector<1x1x1xf32>
    %24 = vector.broadcast %23 : vector<1x1x1xf32> to vector<1x8x128xf32>
    %25 = arith.mulf %0, %24 : vector<1x8x128xf32>
    %26 = vector.shape_cast %25 : vector<1x8x128xf32> to vector<8x128xf32>
    %27 = arith.truncf %26 : vector<8x128xf32> to vector<8x128xbf16>
    %c0_10 = arith.constant 0 : index
    %c0_11 = arith.constant 0 : index
    %28 = vector.load %arg2[%c0_10, %c0_11] : memref<128x128xbf16, #tpu.memory_space<vmem>>, vector<128x128xbf16>
    %cst_12 = arith.constant dense<0.000000e+00> : vector<8x128xf32>
    %29 = tpu.matmul %27, %28, %cst_12 {dimension_numbers = #tpu.dot_dimension_numbers<[1], [0], [0], [1], [0, 0, 1, 1], [], []>} : vector<8x128xbf16>, vector<128x128xbf16>, vector<8x128xf32> -> vector<8x128xf32>
    %c0_13 = arith.constant 0 : index
    %c0_14 = arith.constant 0 : index
    %30 = vector.load %arg3[%c0_13, %c0_14] : memref<1x128xf32, #tpu.memory_space<vmem>>, vector<1x128xf32>
    %31 = vector.broadcast %30 : vector<1x128xf32> to vector<8x128xf32>
    %32 = arith.addf %29, %31 : vector<8x128xf32>
    %cst_15 = arith.constant 2.000000e-01 : f32
    %33 = vector.broadcast %cst_15 : f32 to vector<8x128xf32>
    %34 = arith.mulf %33, %32 : vector<8x128xf32>
    %35 = arith.maximumf %32, %34 : vector<8x128xf32>
    %36 = arith.truncf %35 : vector<8x128xf32> to vector<8x128xbf16>
    %c0_16 = arith.constant 0 : index
    %c0_17 = arith.constant 0 : index
    %37 = vector.load %arg4[%c0_16, %c0_17] : memref<128x128xbf16, #tpu.memory_space<vmem>>, vector<128x128xbf16>
    %cst_18 = arith.constant dense<0.000000e+00> : vector<8x128xf32>
    %38 = tpu.matmul %36, %37, %cst_18 {dimension_numbers = #tpu.dot_dimension_numbers<[1], [0], [0], [1], [0, 0, 1, 1], [], []>} : vector<8x128xbf16>, vector<128x128xbf16>, vector<8x128xf32> -> vector<8x128xf32>
    %c0_19 = arith.constant 0 : index
    %c0_20 = arith.constant 0 : index
    %39 = vector.load %arg5[%c0_19, %c0_20] : memref<1x128xf32, #tpu.memory_space<vmem>>, vector<1x128xf32>
    %40 = vector.broadcast %39 : vector<1x128xf32> to vector<8x128xf32>
    %41 = arith.addf %38, %40 : vector<8x128xf32>
    %cst_21 = arith.constant 2.000000e-01 : f32
    %42 = vector.broadcast %cst_21 : f32 to vector<8x128xf32>
    %43 = arith.mulf %42, %41 : vector<8x128xf32>
    %44 = arith.maximumf %41, %43 : vector<8x128xf32>
    %45 = arith.truncf %44 : vector<8x128xf32> to vector<8x128xbf16>
    %c0_22 = arith.constant 0 : index
    %c0_23 = arith.constant 0 : index
    %46 = vector.load %arg6[%c0_22, %c0_23] : memref<128x256xbf16, #tpu.memory_space<vmem>>, vector<128x256xbf16>
    %cst_24 = arith.constant dense<0.000000e+00> : vector<8x256xf32>
    %47 = tpu.matmul %45, %46, %cst_24 {dimension_numbers = #tpu.dot_dimension_numbers<[1], [0], [0], [1], [0, 0, 1, 1], [], []>} : vector<8x128xbf16>, vector<128x256xbf16>, vector<8x256xf32> -> vector<8x256xf32>
    %c0_25 = arith.constant 0 : index
    %c0_26 = arith.constant 0 : index
    %48 = vector.load %arg7[%c0_25, %c0_26] : memref<1x256xf32, #tpu.memory_space<vmem>>, vector<1x256xf32>
    %49 = vector.broadcast %48 : vector<1x256xf32> to vector<8x256xf32>
    %50 = arith.addf %47, %49 : vector<8x256xf32>
    %c0_27 = arith.constant 0 : index
    %c0_28 = arith.constant 0 : index
    %51 = vector.load %arg14[%c0_27, %c0_28] : memref<8x256xf32, #tpu.memory_space<vmem>>, vector<8x256xf32>
    tpu.vector_store %arg14[%c0_27, %c0_28], %50 {strides = array<i32>} : memref<8x256xf32, #tpu.memory_space<vmem>>, vector<8x256xf32>,
    %52 = vector.extract_strided_slice %50 {offsets = [0, 0], sizes = [8, 128], strides = [1, 1]} : vector<8x256xf32> to vector<8x128xf32>
    %53 = vector.extract_strided_slice %50 {offsets = [0, 128], sizes = [8, 128], strides = [1, 1]} : vector<8x256xf32> to vector<8x128xf32>
    %54 = tpu.concatenate %52, %53 in 0 : vector<8x128xf32>, vector<8x128xf32> -> vector<16x128xf32>
    %55 = arith.truncf %54 : vector<16x128xf32> to vector<16x128xbf16>
    %c0_29 = arith.constant 0 : index
    %c0_30 = arith.constant 0 : index
    %56 = vector.load %arg8[%c0_29, %c0_30] : memref<128x128xbf16, #tpu.memory_space<vmem>>, vector<128x128xbf16>
    %cst_31 = arith.constant dense<0.000000e+00> : vector<16x128xf32>
    %57 = tpu.matmul %55, %56, %cst_31 {dimension_numbers = #tpu.dot_dimension_numbers<[1], [0], [0], [1], [0, 0, 1, 1], [], []>} : vector<16x128xbf16>, vector<128x128xbf16>, vector<16x128xf32> -> vector<16x128xf32>
    %c0_32 = arith.constant 0 : index
    %c0_33 = arith.constant 0 : index
    %58 = vector.load %arg9[%c0_32, %c0_33] : memref<1x128xf32, #tpu.memory_space<vmem>>, vector<1x128xf32>
    %59 = vector.broadcast %58 : vector<1x128xf32> to vector<16x128xf32>
    %60 = arith.addf %57, %59 : vector<16x128xf32>
    %cst_34 = arith.constant 2.000000e-01 : f32
    %61 = vector.broadcast %cst_34 : f32 to vector<16x128xf32>
    %62 = arith.mulf %61, %60 : vector<16x128xf32>
    %63 = arith.maximumf %60, %62 : vector<16x128xf32>
    %64 = arith.truncf %63 : vector<16x128xf32> to vector<16x128xbf16>
    %c0_35 = arith.constant 0 : index
    %c0_36 = arith.constant 0 : index
    %65 = vector.load %arg10[%c0_35, %c0_36] : memref<128x128xbf16, #tpu.memory_space<vmem>>, vector<128x128xbf16>
    %cst_37 = arith.constant dense<0.000000e+00> : vector<16x128xf32>
    %66 = tpu.matmul %64, %65, %cst_37 {dimension_numbers = #tpu.dot_dimension_numbers<[1], [0], [0], [1], [0, 0, 1, 1], [], []>} : vector<16x128xbf16>, vector<128x128xbf16>, vector<16x128xf32> -> vector<16x128xf32>
    %c0_38 = arith.constant 0 : index
    %c0_39 = arith.constant 0 : index
    %67 = vector.load %arg11[%c0_38, %c0_39] : memref<1x128xf32, #tpu.memory_space<vmem>>, vector<1x128xf32>
    %68 = vector.broadcast %67 : vector<1x128xf32> to vector<16x128xf32>
    %69 = arith.addf %66, %68 : vector<16x128xf32>
    %cst_40 = arith.constant 2.000000e-01 : f32
    %70 = vector.broadcast %cst_40 : f32 to vector<16x128xf32>
    %71 = arith.mulf %70, %69 : vector<16x128xf32>
    %72 = arith.maximumf %69, %71 : vector<16x128xf32>
    %c0_41 = arith.constant 0 : index
    %c0_42 = arith.constant 0 : index
    %73 = vector.load %arg12[%c0_41, %c0_42] : memref<1x128xf32, #tpu.memory_space<vmem>>, vector<1x128xf32>
    %74 = vector.broadcast %73 : vector<1x128xf32> to vector<16x128xf32>
    %75 = arith.mulf %72, %74 : vector<16x128xf32>
    %cst_43 = arith.constant dense<0.000000e+00> : vector<16xf32>
    %76 = vector.multi_reduction <add>, %75, %cst_43 [1] : vector<16x128xf32> to vector<16xf32>
    %77 = vector.shape_cast %76 : vector<16xf32> to vector<16x1xf32>
    %c0_44 = arith.constant 0 : index
    %c0_45 = arith.constant 0 : index
    %78 = vector.load %arg13[%c0_44, %c0_45] : memref<1x1xf32, #tpu.memory_space<vmem>>, vector<1x1xf32>
    %79 = vector.broadcast %78 : vector<1x1xf32> to vector<16x1xf32>
    %80 = arith.addf %77, %79 : vector<16x1xf32>
    %81 = arith.negf %80 : vector<16x1xf32>
    %82 = math.exp %81 : vector<16x1xf32>
    %cst_46 = arith.constant 1.000000e+00 : f32
    %83 = vector.broadcast %cst_46 : f32 to vector<16x1xf32>
    %84 = arith.addf %83, %82 : vector<16x1xf32>
    %85 = arith.divf %83, %84 : vector<16x1xf32>
    %cst_47 = arith.constant 2.000000e+00 : f32
    %86 = vector.broadcast %cst_47 : f32 to vector<16x1xf32>
    %87 = arith.mulf %85, %86 : vector<16x1xf32>
    %88 = vector.extract_strided_slice %87 {offsets = [0, 0], sizes = [8, 1], strides = [1, 1]} : vector<16x1xf32> to vector<8x1xf32>
    %89 = vector.extract_strided_slice %87 {offsets = [8, 0], sizes = [8, 1], strides = [1, 1]} : vector<16x1xf32> to vector<8x1xf32>
    %90 = tpu.concatenate %88, %89 in 1 : vector<8x1xf32>, vector<8x1xf32> -> vector<8x2xf32>
    %c0_48 = arith.constant 0 : index
    %c0_49 = arith.constant 0 : index
    %91 = vector.load %arg15[%c0_48, %c0_49] : memref<8x2xf32, #tpu.memory_space<vmem>>, vector<8x2xf32>
    tpu.vector_store %arg15[%c0_48, %c0_49], %90 {strides = array<i32>} : memref<8x2xf32, #tpu.memory_space<vmem>>, vector<8x2xf32>,
    return
  }
  func.func @transform_0(%arg0: i32) -> (i32, i32, i32) {
    %c0_i32 = arith.constant 0 : i32
    %c0_i32_0 = arith.constant 0 : i32
    %c0_i32_1 = arith.constant 0 : i32
    return %arg0, %c0_i32, %c0_i32_0 : i32, i32, i32
  }
  func.func @transform_1(%arg0: i32) -> (i32, i32) {
    %c0_i32 = arith.constant 0 : i32
    %c0_i32_0 = arith.constant 0 : i32
    %c0_i32_1 = arith.constant 0 : i32
    return %c0_i32, %c0_i32_0 : i32, i32
  }
  func.func @transform_2(%arg0: i32) -> (i32, i32) {
    %c0_i32 = arith.constant 0 : i32
    %c0_i32_0 = arith.constant 0 : i32
    %c0_i32_1 = arith.constant 0 : i32
    return %c0_i32, %c0_i32_0 : i32, i32
  }
  func.func @transform_3(%arg0: i32) -> (i32, i32) {
    %c0_i32 = arith.constant 0 : i32
    %c0_i32_0 = arith.constant 0 : i32
    %c0_i32_1 = arith.constant 0 : i32
    return %c0_i32, %c0_i32_0 : i32, i32
  }
  func.func @transform_4(%arg0: i32) -> (i32, i32) {
    %c0_i32 = arith.constant 0 : i32
    %c0_i32_0 = arith.constant 0 : i32
    %c0_i32_1 = arith.constant 0 : i32
    return %c0_i32, %c0_i32_0 : i32, i32
  }
  func.func @transform_5(%arg0: i32) -> (i32, i32) {
    %c0_i32 = arith.constant 0 : i32
    %c0_i32_0 = arith.constant 0 : i32
    %c0_i32_1 = arith.constant 0 : i32
    return %c0_i32, %c0_i32_0 : i32, i32
  }
  func.func @transform_6(%arg0: i32) -> (i32, i32) {
    %c0_i32 = arith.constant 0 : i32
    %c0_i32_0 = arith.constant 0 : i32
    %c0_i32_1 = arith.constant 0 : i32
    return %c0_i32, %c0_i32_0 : i32, i32
  }
  func.func @transform_7(%arg0: i32) -> (i32, i32) {
    %c0_i32 = arith.constant 0 : i32
    %c0_i32_0 = arith.constant 0 : i32
    %c0_i32_1 = arith.constant 0 : i32
    return %c0_i32, %c0_i32_0 : i32, i32
  }
  func.func @transform_8(%arg0: i32) -> (i32, i32) {
    %c0_i32 = arith.constant 0 : i32
    %c0_i32_0 = arith.constant 0 : i32
    %c0_i32_1 = arith.constant 0 : i32
    return %c0_i32, %c0_i32_0 : i32, i32
  }
  func.func @transform_9(%arg0: i32) -> (i32, i32) {
    %c0_i32 = arith.constant 0 : i32
    %c0_i32_0 = arith.constant 0 : i32
    %c0_i32_1 = arith.constant 0 : i32
    return %c0_i32, %c0_i32_0 : i32, i32
  }
  func.func @transform_10(%arg0: i32) -> (i32, i32) {
    %c0_i32 = arith.constant 0 : i32
    %c0_i32_0 = arith.constant 0 : i32
    %c0_i32_1 = arith.constant 0 : i32
    return %c0_i32, %c0_i32_0 : i32, i32
  }
  func.func @transform_11(%arg0: i32) -> (i32, i32) {
    %c0_i32 = arith.constant 0 : i32
    %c0_i32_0 = arith.constant 0 : i32
    %c0_i32_1 = arith.constant 0 : i32
    return %c0_i32, %c0_i32_0 : i32, i32
  }
  func.func @transform_12(%arg0: i32) -> (i32, i32) {
    %c0_i32 = arith.constant 0 : i32
    %c0_i32_0 = arith.constant 0 : i32
    %c0_i32_1 = arith.constant 0 : i32
    return %c0_i32, %c0_i32_0 : i32, i32
  }
  func.func @transform_13(%arg0: i32) -> (i32, i32) {
    %c0_i32 = arith.constant 0 : i32
    %c0_i32_0 = arith.constant 0 : i32
    return %arg0, %c0_i32 : i32, i32
  }
  func.func @transform_14(%arg0: i32) -> (i32, i32) {
    %c0_i32 = arith.constant 0 : i32
    %c0_i32_0 = arith.constant 0 : i32
    return %arg0, %c0_i32 : i32, i32
  }
}

</mosaic_0001>

<llo_original>
// kernel: branch_forward.1
$region0: #{branch_forward.1}
  #allocation0 [shape = 'u32[]', space=smem, size = 0x4, offset = 0x4, fixed_abs, tag = 'smem constant byte address 0x4 - core index']
  #allocation1 [shape = 'u32[72,128]{1,0:T(1,128)}', space=vmem, size = 0x9000, scoped, tag = 'internal scratch']
  #allocation2 [shape = 'f32[1,1]{1,0:T(1,128)S(1)}', space=vmem, size = 0x200, scoped, tag = 'scoped memory for branch_forward.1']
  %s0 = inlined_call_operand.vmem [shape: f32[2,8,128], index: 0, kind: input, shape index: {}]
  %s1 = inlined_call_operand.vmem [shape: bf16[128,128], index: 1, kind: input, shape index: {}]
  %s2 = inlined_call_operand.vmem [shape: f32[1,128], index: 2, kind: input, shape index: {}]
  %s3 = inlined_call_operand.vmem [shape: bf16[128,128], index: 3, kind: input, shape index: {}]
  %s4 = inlined_call_operand.vmem [shape: f32[1,128], index: 4, kind: input, shape index: {}]
  %s5 = inlined_call_operand.vmem [shape: bf16[128,256], index: 5, kind: input, shape index: {}]
  %s6 = inlined_call_operand.vmem [shape: f32[1,256], index: 6, kind: input, shape index: {}]
  %s7 = inlined_call_operand.vmem [shape: bf16[128,128], index: 7, kind: input, shape index: {}]
  %s8 = inlined_call_operand.vmem [shape: f32[1,128], index: 8, kind: input, shape index: {}]
  %s9 = inlined_call_operand.vmem [shape: bf16[128,128], index: 9, kind: input, shape index: {}]
  %s10 = inlined_call_operand.vmem [shape: f32[1,128], index: 10, kind: input, shape index: {}]
  %s11 = inlined_call_operand.vmem [shape: f32[1,128], index: 11, kind: input, shape index: {}]
  %s12 = inlined_call_operand.<no memory space> [shape: f32[1,1], index: 12, kind: input, shape index: {}]
  %s13 = inlined_call_operand.vmem [shape: f32[16,256], index: 13, kind: output, shape index: {0}]
  %s14 = inlined_call_operand.vmem [shape: f32[16,2], index: 14, kind: output, shape index: {1}]
  %15 = xla_tuple %s13, %s14
  %s16 = sld [smem:[#allocation0]]
  $region93: #{branch_forward.1} parent=0
    _
  %s18 = ssub.s32 1, %s16
  %s19 = scalar_select 0, %s18, %s16
  %v20 = vstv %s12
  %21 = vst [vmem:[#allocation2] sm:$0x1] %v20
  loop: start=0, step=1, limit=4
  $region2: #{branch_forward.1} parent=0 // loop_pre_header
    _
  $region3: #{branch_forward.1} parent=0 // loop_header
    %s23 = sphi 0, %s27
    %p24 = scmp.ge.s32.totalorder %s23, 4
    %s33 = sphi 0, %s35
    %s36 = sphi 0, %s33
    %s37 = sphi 0, %s36
    %s53 = sphi 0, %s37
    %s57 = sphi 0, %s57
    %s59 = sphi 0, %s57
    %s60 = sphi 0, %s59
    %s74 = sphi 0, %s60
    %s78 = sphi 0, %s78
    %s80 = sphi 0, %s78
    %s81 = sphi 0, %s80
    %s95 = sphi 0, %s81
    %s99 = sphi 0, %s99
    %s101 = sphi 0, %s99
    %s102 = sphi 0, %s101
    %s116 = sphi 0, %s102
    %s120 = sphi 0, %s120
    %s122 = sphi 0, %s120
    %s123 = sphi 0, %s122
    %s137 = sphi 0, %s123
    %s141 = sphi 0, %s141
    %s143 = sphi 0, %s141
    %s144 = sphi 0, %s143
    %s158 = sphi 0, %s144
    %s162 = sphi 0, %s162
    %s164 = sphi 0, %s162
    %s165 = sphi 0, %s164
    %s179 = sphi 0, %s165
    %s183 = sphi 0, %s183
    %s185 = sphi 0, %s183
    %s186 = sphi 0, %s185
    %s200 = sphi 0, %s186
    %s204 = sphi 0, %s204
    %s206 = sphi 0, %s204
    %s207 = sphi 0, %s206
    %s221 = sphi 0, %s207
    %s225 = sphi 0, %s225
    %s227 = sphi 0, %s225
    %s228 = sphi 0, %s227
    %s242 = sphi 0, %s228
    %s246 = sphi 0, %s246
    %s248 = sphi 0, %s246
    %s249 = sphi 0, %s248
    %s263 = sphi 0, %s249
    %s267 = sphi 0, %s267
    %s269 = sphi 0, %s267
    %s270 = sphi 0, %s269
    %s284 = sphi 0, %s270
    %s288 = sphi 0, %s288
    %s290 = sphi 0, %s288
    %s291 = sphi 0, %s290
    %s305 = sphi 0, %s291
    %s311 = sphi 0, %s313
    %s314 = sphi 0, %s311
    %s315 = sphi 0, %s314
    %s331 = sphi 0, %s315
    %s337 = sphi 0, %s339
    %s340 = sphi 0, %s337
    %s341 = sphi 0, %s340
    %s357 = sphi 0, %s341
  $region4: #{branch_forward.1} parent=0 // loop_header_branch
    %26 = sbr.rel (%p24) target = $region8
  $region5: #{branch_forward.1} parent=0 // loop_body
    %s28 = ssub.s32 %s23, 1
    %s29 = ssub.s32 %s23, 2
    %s30 = sadd.s32 %s23, 1
    %s31 = ssub.s32 %s23, %s30
    %p32 = scmp.eq.s32.totalorder %s31, 0
    %s34 = sadd.s32 %s33, 1
    %s35 = scalar_select %p32, %s33, %s34
    %p38 = pneg %p32
    %p39 = scmp.eq.s32.totalorder %s23, 1
    %p40 = por %p38, %p39
    %p41 = scmp.ne.s32.totalorder %s33, %s36
    %p42 = scmp.eq.s32.totalorder %s23, 0
    %p43 = por %p41, %p42
    %p44 = scmp.ne.s32.totalorder %s33, %s36
    %p45 = scmp.eq.s32.totalorder %s28, 1
    %p46 = por %p44, %p45
    %p47 = scmp.ne.s32.totalorder %s36, %s37
    %p48 = scmp.eq.s32.totalorder %s28, 0
    %p49 = por %p47, %p48
    %p50 = scmp.ne.s32.totalorder %s36, %s37
    %p51 = scmp.eq.s32.totalorder %s29, 1
    %p52 = por %p50, %p51
    %p54 = scmp.ne.s32.totalorder %s37, %s53
    %p55 = scmp.eq.s32.totalorder %s29, 0
    %p56 = por %p54, %p55
    %s58 = sadd.s32 %s57, 1
    %p61 = scmp.eq.s32.totalorder %s23, 1
    %p62 = scmp.ne.s32.totalorder %s57, %s59
    %p63 = scmp.eq.s32.totalorder %s23, 0
    %p64 = por %p62, %p63
    %p65 = scmp.ne.s32.totalorder %s57, %s59
    %p66 = scmp.eq.s32.totalorder %s28, 1
    %p67 = por %p65, %p66
    %p68 = scmp.ne.s32.totalorder %s59, %s60
    %p69 = scmp.eq.s32.totalorder %s28, 0
    %p70 = por %p68, %p69
    %p71 = scmp.ne.s32.totalorder %s59, %s60
    %p72 = scmp.eq.s32.totalorder %s29, 1
    %p73 = por %p71, %p72
    %p75 = scmp.ne.s32.totalorder %s60, %s74
    %p76 = scmp.eq.s32.totalorder %s29, 0
    %p77 = por %p75, %p76
    %s79 = sadd.s32 %s78, 1
    %p82 = scmp.eq.s32.totalorder %s23, 1
    %p83 = scmp.ne.s32.totalorder %s78, %s80
    %p84 = scmp.eq.s32.totalorder %s23, 0
    %p85 = por %p83, %p84
    %p86 = scmp.ne.s32.totalorder %s78, %s80
    %p87 = scmp.eq.s32.totalorder %s28, 1
    %p88 = por %p86, %p87
    %p89 = scmp.ne.s32.totalorder %s80, %s81
    %p90 = scmp.eq.s32.totalorder %s28, 0
    %p91 = por %p89, %p90
    %p92 = scmp.ne.s32.totalorder %s80, %s81
    %p93 = scmp.eq.s32.totalorder %s29, 1
    %p94 = por %p92, %p93
    %p96 = scmp.ne.s32.totalorder %s81, %s95
    %p97 = scmp.eq.s32.totalorder %s29, 0
    %p98 = por %p96, %p97
    %s100 = sadd.s32 %s99, 1
    %p103 = scmp.eq.s32.totalorder %s23, 1
    %p104 = scmp.ne.s32.totalorder %s99, %s101
    %p105 = scmp.eq.s32.totalorder %s23, 0
    %p106 = por %p104, %p105
    %p107 = scmp.ne.s32.totalorder %s99, %s101
    %p108 = scmp.eq.s32.totalorder %s28, 1
    %p109 = por %p107, %p108
    %p110 = scmp.ne.s32.totalorder %s101, %s102
    %p111 = scmp.eq.s32.totalorder %s28, 0
    %p112 = por %p110, %p111
    %p113 = scmp.ne.s32.totalorder %s101, %s102
    %p114 = scmp.eq.s32.totalorder %s29, 1
    %p115 = por %p113, %p114
    %p117 = scmp.ne.s32.totalorder %s102, %s116
    %p118 = scmp.eq.s32.totalorder %s29, 0
    %p119 = por %p117, %p118
    %s121 = sadd.s32 %s120, 1
    %p124 = scmp.eq.s32.totalorder %s23, 1
    %p125 = scmp.ne.s32.totalorder %s120, %s122
    %p126 = scmp.eq.s32.totalorder %s23, 0
    %p127 = por %p125, %p126
    %p128 = scmp.ne.s32.totalorder %s120, %s122
    %p129 = scmp.eq.s32.totalorder %s28, 1
    %p130 = por %p128, %p129
    %p131 = scmp.ne.s32.totalorder %s122, %s123
    %p132 = scmp.eq.s32.totalorder %s28, 0
    %p133 = por %p131, %p132
    %p134 = scmp.ne.s32.totalorder %s122, %s123
    %p135 = scmp.eq.s32.totalorder %s29, 1
    %p136 = por %p134, %p135
    %p138 = scmp.ne.s32.totalorder %s123, %s137
    %p139 = scmp.eq.s32.totalorder %s29, 0
    %p140 = por %p138, %p139
    %s142 = sadd.s32 %s141, 1
    %p145 = scmp.eq.s32.totalorder %s23, 1
    %p146 = scmp.ne.s32.totalorder %s141, %s143
    %p147 = scmp.eq.s32.totalorder %s23, 0
    %p148 = por %p146, %p147
    %p149 = scmp.ne.s32.totalorder %s141, %s143
    %p150 = scmp.eq.s32.totalorder %s28, 1
    %p151 = por %p149, %p150
    %p152 = scmp.ne.s32.totalorder %s143, %s144
    %p153 = scmp.eq.s32.totalorder %s28, 0
    %p154 = por %p152, %p153
    %p155 = scmp.ne.s32.totalorder %s143, %s144
    %p156 = scmp.eq.s32.totalorder %s29, 1
    %p157 = por %p155, %p156
    %p159 = scmp.ne.s32.totalorder %s144, %s158
    %p160 = scmp.eq.s32.totalorder %s29, 0
    %p161 = por %p159, %p160
    %s163 = sadd.s32 %s162, 1
    %p166 = scmp.eq.s32.totalorder %s23, 1
    %p167 = scmp.ne.s32.totalorder %s162, %s164
    %p168 = scmp.eq.s32.totalorder %s23, 0
    %p169 = por %p167, %p168
    %p170 = scmp.ne.s32.totalorder %s162, %s164
    %p171 = scmp.eq.s32.totalorder %s28, 1
    %p172 = por %p170, %p171
    %p173 = scmp.ne.s32.totalorder %s164, %s165
    %p174 = scmp.eq.s32.totalorder %s28, 0
    %p175 = por %p173, %p174
    %p176 = scmp.ne.s32.totalorder %s164, %s165
    %p177 = scmp.eq.s32.totalorder %s29, 1
    %p178 = por %p176, %p177
    %p180 = scmp.ne.s32.totalorder %s165, %s179
    %p181 = scmp.eq.s32.totalorder %s29, 0
    %p182 = por %p180, %p181
    %s184 = sadd.s32 %s183, 1
    %p187 = scmp.eq.s32.totalorder %s23, 1
    %p188 = scmp.ne.s32.totalorder %s183, %s185
    %p189 = scmp.eq.s32.totalorder %s23, 0
    %p190 = por %p188, %p189
    %p191 = scmp.ne.s32.totalorder %s183, %s185
    %p192 = scmp.eq.s32.totalorder %s28, 1
    %p193 = por %p191, %p192
    %p194 = scmp.ne.s32.totalorder %s185, %s186
    %p195 = scmp.eq.s32.totalorder %s28, 0
    %p196 = por %p194, %p195
    %p197 = scmp.ne.s32.totalorder %s185, %s186
    %p198 = scmp.eq.s32.totalorder %s29, 1
    %p199 = por %p197, %p198
    %p201 = scmp.ne.s32.totalorder %s186, %s200
    %p202 = scmp.eq.s32.totalorder %s29, 0
    %p203 = por %p201, %p202
    %s205 = sadd.s32 %s204, 1
    %p208 = scmp.eq.s32.totalorder %s23, 1
    %p209 = scmp.ne.s32.totalorder %s204, %s206
    %p210 = scmp.eq.s32.totalorder %s23, 0
    %p211 = por %p209, %p210
    %p212 = scmp.ne.s32.totalorder %s204, %s206
    %p213 = scmp.eq.s32.totalorder %s28, 1
    %p214 = por %p212, %p213
    %p215 = scmp.ne.s32.totalorder %s206, %s207
    %p216 = scmp.eq.s32.totalorder %s28, 0
    %p217 = por %p215, %p216
    %p218 = scmp.ne.s32.totalorder %s206, %s207
    %p219 = scmp.eq.s32.totalorder %s29, 1
    %p220 = por %p218, %p219
    %p222 = scmp.ne.s32.totalorder %s207, %s221
    %p223 = scmp.eq.s32.totalorder %s29, 0
    %p224 = por %p222, %p223
    %s226 = sadd.s32 %s225, 1
    %p229 = scmp.eq.s32.totalorder %s23, 1
    %p230 = scmp.ne.s32.totalorder %s225, %s227
    %p231 = scmp.eq.s32.totalorder %s23, 0
    %p232 = por %p230, %p231
    %p233 = scmp.ne.s32.totalorder %s225, %s227
    %p234 = scmp.eq.s32.totalorder %s28, 1
    %p235 = por %p233, %p234
    %p236 = scmp.ne.s32.totalorder %s227, %s228
    %p237 = scmp.eq.s32.totalorder %s28, 0
    %p238 = por %p236, %p237
    %p239 = scmp.ne.s32.totalorder %s227, %s228
    %p240 = scmp.eq.s32.totalorder %s29, 1
    %p241 = por %p239, %p240
    %p243 = scmp.ne.s32.totalorder %s228, %s242
    %p244 = scmp.eq.s32.totalorder %s29, 0
    %p245 = por %p243, %p244
    %s247 = sadd.s32 %s246, 1
    %p250 = scmp.eq.s32.totalorder %s23, 1
    %p251 = scmp.ne.s32.totalorder %s246, %s248
    %p252 = scmp.eq.s32.totalorder %s23, 0
    %p253 = por %p251, %p252
    %p254 = scmp.ne.s32.totalorder %s246, %s248
    %p255 = scmp.eq.s32.totalorder %s28, 1
    %p256 = por %p254, %p255
    %p257 = scmp.ne.s32.totalorder %s248, %s249
    %p258 = scmp.eq.s32.totalorder %s28, 0
    %p259 = por %p257, %p258
    %p260 = scmp.ne.s32.totalorder %s248, %s249
    %p261 = scmp.eq.s32.totalorder %s29, 1
    %p262 = por %p260, %p261
    %p264 = scmp.ne.s32.totalorder %s249, %s263
    %p265 = scmp.eq.s32.totalorder %s29, 0
    %p266 = por %p264, %p265
    %s268 = sadd.s32 %s267, 1
    %p271 = scmp.eq.s32.totalorder %s23, 1
    %p272 = scmp.ne.s32.totalorder %s267, %s269
    %p273 = scmp.eq.s32.totalorder %s23, 0
    %p274 = por %p272, %p273
    %p275 = scmp.ne.s32.totalorder %s267, %s269
    %p276 = scmp.eq.s32.totalorder %s28, 1
    %p277 = por %p275, %p276
    %p278 = scmp.ne.s32.totalorder %s269, %s270
    %p279 = scmp.eq.s32.totalorder %s28, 0
    %p280 = por %p278, %p279
    %p281 = scmp.ne.s32.totalorder %s269, %s270
    %p282 = scmp.eq.s32.totalorder %s29, 1
    %p283 = por %p281, %p282
    %p285 = scmp.ne.s32.totalorder %s270, %s284
    %p286 = scmp.eq.s32.totalorder %s29, 0
    %p287 = por %p285, %p286
    %s289 = sadd.s32 %s288, 1
    %p292 = scmp.eq.s32.totalorder %s23, 1
    %p293 = scmp.ne.s32.totalorder %s288, %s290
    %p294 = scmp.eq.s32.totalorder %s23, 0
    %p295 = por %p293, %p294
    %p296 = scmp.ne.s32.totalorder %s288, %s290
    %p297 = scmp.eq.s32.totalorder %s28, 1
    %p298 = por %p296, %p297
    %p299 = scmp.ne.s32.totalorder %s290, %s291
    %p300 = scmp.eq.s32.totalorder %s28, 0
    %p301 = por %p299, %p300
    %p302 = scmp.ne.s32.totalorder %s290, %s291
    %p303 = scmp.eq.s32.totalorder %s29, 1
    %p304 = por %p302, %p303
    %p306 = scmp.ne.s32.totalorder %s291, %s305
    %p307 = scmp.eq.s32.totalorder %s29, 0
    %p308 = por %p306, %p307
    %s309 = ssub.s32 %s23, %s30
    %p310 = scmp.eq.s32.totalorder %s309, 0
    %s312 = sadd.s32 %s311, 1
    %s313 = scalar_select %p310, %s311, %s312
    %p316 = pneg %p310
    %p317 = scmp.eq.s32.totalorder %s23, 1
    %p318 = por %p316, %p317
    %p319 = scmp.ne.s32.totalorder %s311, %s314
    %p320 = scmp.eq.s32.totalorder %s23, 0
    %p321 = por %p319, %p320
    %p322 = scmp.ne.s32.totalorder %s311, %s314
    %p323 = scmp.eq.s32.totalorder %s28, 1
    %p324 = por %p322, %p323
    %p325 = scmp.ne.s32.totalorder %s314, %s315
    %p326 = scmp.eq.s32.totalorder %s28, 0
    %p327 = por %p325, %p326
    %p328 = scmp.ne.s32.totalorder %s314, %s315
    %p329 = scmp.eq.s32.totalorder %s29, 1
    %p330 = por %p328, %p329
    %p332 = scmp.ne.s32.totalorder %s315, %s331
    %p333 = scmp.eq.s32.totalorder %s29, 0
    %p334 = por %p332, %p333
    %s335 = ssub.s32 %s23, %s30
    %p336 = scmp.eq.s32.totalorder %s335, 0
    %s338 = sadd.s32 %s337, 1
    %s339 = scalar_select %p336, %s337, %s338
    %p342 = pneg %p336
    %p343 = scmp.eq.s32.totalorder %s23, 1
    %p344 = por %p342, %p343
    %p345 = scmp.ne.s32.totalorder %s337, %s340
    %p346 = scmp.eq.s32.totalorder %s23, 0
    %p347 = por %p345, %p346
    %p348 = scmp.ne.s32.totalorder %s337, %s340
    %p349 = scmp.eq.s32.totalorder %s28, 1
    %p350 = por %p348, %p349
    %p351 = scmp.ne.s32.totalorder %s340, %s341
    %p352 = scmp.eq.s32.totalorder %s28, 0
    %p353 = por %p351, %p352
    %p354 = scmp.ne.s32.totalorder %s340, %s341
    %p355 = scmp.eq.s32.totalorder %s29, 1
    %p356 = por %p354, %p355
    %p358 = scmp.ne.s32.totalorder %s341, %s357
    %p359 = scmp.eq.s32.totalorder %s29, 0
    %p360 = por %p358, %p359
    %p361 = scmp.le.s32.totalorder 1, %s23
    %p362 = scmp.lt.s32.totalorder %s23, 3
    %p363 = pnand %p361, %p362
    %p364 = pneg %p363
    // Predicated region
    $region9: #{branch_forward.1} parent=5 // pred_check
      _
    $region10: #{branch_forward.1} parent=5 // pred_check_branch
      %366 = sbr.rel (%p363) target = $region12
    $region11: #{branch_forward.1} parent=5 // pred_region
      %s367 = ssub.s32 %s23, 1
      // Predicated region
      $region13: #{branch_forward.1} parent=11 // pred_check
        %p368 = pneg %p70
      $region14: #{branch_forward.1} parent=11 // pred_check_branch
        %370 = sbr.rel (%p368) target = $region16
      $region15: #{branch_forward.1} parent=11 // pred_region
        _
      $region16: #{branch_forward.1} parent=11 // pred_fallthru
        _
      // Predicated region
      $region17: #{branch_forward.1} parent=11 // pred_check
        %p371 = pneg %p91
      $region18: #{branch_forward.1} parent=11 // pred_check_branch
        %373 = sbr.rel (%p371) target = $region20
      $region19: #{branch_forward.1} parent=11 // pred_region
        _
      $region20: #{branch_forward.1} parent=11 // pred_fallthru
        _
      // Predicated region
      $region21: #{branch_forward.1} parent=11 // pred_check
        %p374 = pneg %p112
      $region22: #{branch_forward.1} parent=11 // pred_check_branch
        %376 = sbr.rel (%p374) target = $region24
      $region23: #{branch_forward.1} parent=11 // pred_region
        _
      $region24: #{branch_forward.1} parent=11 // pred_fallthru
        _
      // Predicated region
      $region25: #{branch_forward.1} parent=11 // pred_check
        %p377 = pneg %p133
      $region26: #{branch_forward.1} parent=11 // pred_check_branch
        %379 = sbr.rel (%p377) target = $region28
      $region27: #{branch_forward.1} parent=11 // pred_region
        _
      $region28: #{branch_forward.1} parent=11 // pred_fallthru
        _
      // Predicated region
      $region29: #{branch_forward.1} parent=11 // pred_check
        %p380 = pneg %p154
      $region30: #{branch_forward.1} parent=11 // pred_check_branch
        %382 = sbr.rel (%p380) target = $region32
      $region31: #{branch_forward.1} parent=11 // pred_region
        _
      $region32: #{branch_forward.1} parent=11 // pred_fallthru
        _
      // Predicated region
      $region33: #{branch_forward.1} parent=11 // pred_check
        %p383 = pneg %p175
      $region34: #{branch_forward.1} parent=11 // pred_check_branch
        %385 = sbr.rel (%p383) target = $region36
      $region35: #{branch_forward.1} parent=11 // pred_region
        _
      $region36: #{branch_forward.1} parent=11 // pred_fallthru
        _
      // Predicated region
      $region37: #{branch_forward.1} parent=11 // pred_check
        %p386 = pneg %p196
      $region38: #{branch_forward.1} parent=11 // pred_check_branch
        %388 = sbr.rel (%p386) target = $region40
      $region39: #{branch_forward.1} parent=11 // pred_region
        _
      $region40: #{branch_forward.1} parent=11 // pred_fallthru
        _
      // Predicated region
      $region41: #{branch_forward.1} parent=11 // pred_check
        %p389 = pneg %p217
      $region42: #{branch_forward.1} parent=11 // pred_check_branch
        %391 = sbr.rel (%p389) target = $region44
      $region43: #{branch_forward.1} parent=11 // pred_region
        _
      $region44: #{branch_forward.1} parent=11 // pred_fallthru
        _
      // Predicated region
      $region45: #{branch_forward.1} parent=11 // pred_check
        %p392 = pneg %p238
      $region46: #{branch_forward.1} parent=11 // pred_check_branch
        %394 = sbr.rel (%p392) target = $region48
      $region47: #{branch_forward.1} parent=11 // pred_region
        _
      $region48: #{branch_forward.1} parent=11 // pred_fallthru
        _
      // Predicated region
      $region49: #{branch_forward.1} parent=11 // pred_check
        %p395 = pneg %p259
      $region50: #{branch_forward.1} parent=11 // pred_check_branch
        %397 = sbr.rel (%p395) target = $region52
      $region51: #{branch_forward.1} parent=11 // pred_region
        _
      $region52: #{branch_forward.1} parent=11 // pred_fallthru
        _
      // Predicated region
      $region53: #{branch_forward.1} parent=11 // pred_check
        %p398 = pneg %p280
      $region54: #{branch_forward.1} parent=11 // pred_check_branch
        %400 = sbr.rel (%p398) target = $region56
      $region55: #{branch_forward.1} parent=11 // pred_region
        _
      $region56: #{branch_forward.1} parent=11 // pred_fallthru
        _
      // Predicated region
      $region57: #{branch_forward.1} parent=11 // pred_check
        %p401 = pneg %p301
      $region58: #{branch_forward.1} parent=11 // pred_check_branch
        %403 = sbr.rel (%p401) target = $region60
      $region59: #{branch_forward.1} parent=11 // pred_region
        _
      $region60: #{branch_forward.1} parent=11 // pred_fallthru
        _
    $region12: #{branch_forward.1} parent=5 // pred_fallthru
      _
    %p404 = scmp.lt.s32.totalorder %s23, 2
    // Predicated region
    $region61: #{branch_forward.1} parent=5 // pred_check
      %p405 = pneg %p404
    $region62: #{branch_forward.1} parent=5 // pred_check_branch
      %407 = sbr.rel (%p405) target = $region64
    $region63: #{branch_forward.1} parent=5 // pred_region
      // Predicated region
      $region65: #{branch_forward.1} parent=63 // pred_check
        %p408 = pneg %p43
      $region66: #{branch_forward.1} parent=63 // pred_check_branch
        %410 = sbr.rel (%p408) target = $region68
      $region67: #{branch_forward.1} parent=63 // pred_region
        %p411 = scmp.lt.s32.totalorder %s23, 1
        %s412 = scalar_select %p411, %s23, 1
        %s413 = smul.addr %s412, 8
        %s414 = scalar_lea.vmem %s0, %s413
      $region68: #{branch_forward.1} parent=63 // pred_fallthru
        _
    $region64: #{branch_forward.1} parent=5 // pred_fallthru
      _
    %p415 = scmp.le.s32.totalorder 1, %s23
    %p416 = scmp.lt.s32.totalorder %s23, 3
    %p417 = pnand %p415, %p416
    %p418 = pneg %p417
    // Predicated region
    $region69: #{branch_forward.1} parent=5 // pred_check
      _
    $region70: #{branch_forward.1} parent=5 // pred_check_branch
      %420 = sbr.rel (%p417) target = $region72
    $region71: #{branch_forward.1} parent=5 // pred_region
      %s421 = ssub.s32 %s23, 1
      %p422 = scmp.lt.s32.totalorder %s28, 1
      %s423 = scalar_select %p422, %s28, 1
      %s424 = smul.addr %s423, 8
      %s425 = scalar_lea.vmem %s0, %s424
      %p426 = pneg %p49
      %p427 = pneg %p46
      %p428 = pneg %p70
      %p429 = pneg %p67
      %p430 = pneg %p91
      %p431 = pneg %p88
      %p432 = pneg %p112
      %p433 = pneg %p109
      %p434 = pneg %p133
      %p435 = pneg %p130
      %p436 = pneg %p154
      %p437 = pneg %p151
      %p438 = pneg %p175
      %p439 = pneg %p172
      %p440 = pneg %p196
      %p441 = pneg %p193
      %p442 = pneg %p217
      %p443 = pneg %p214
      %p444 = pneg %p238
      %p445 = pneg %p235
      %p446 = pneg %p259
      %p447 = pneg %p256
      %p448 = pneg %p280
      %p449 = pneg %p277
      %p450 = pneg %p301
      %p451 = pneg %p298
      %p452 = pneg %p327
      %p453 = pneg %p324
      %p454 = scmp.lt.s32.totalorder %s28, 1
      %s455 = scalar_select %p454, %s28, 1
      %s456 = smul.addr %s455, 2
      %s457 = smul.addr %s456, 8
      %s458 = scalar_lea.vmem %s13, %s457
      %p459 = pneg %p353
      %p460 = pneg %p350
      %p461 = scmp.lt.s32.totalorder %s28, 1
      %s462 = scalar_select %p461, %s28, 1
      %s463 = smul.addr %s462, 8
      %s464 = scalar_lea.vmem %s14, %s463
      %p465 = scmp.lt.s32.totalorder %s28, 1
      %s466 = scalar_select %p465, %s28, 1
      %s467 = smul.addr %s466, 8
      %s468 = scalar_lea.vmem %s0, %s467
      %p469 = scmp.lt.s32.totalorder %s28, 1
      %s470 = scalar_select %p469, %s28, 1
      %s471 = smul.addr %s470, 2
      %s472 = smul.addr %s471, 8
      %s473 = scalar_lea.vmem %s13, %s472
      %p474 = scmp.lt.s32.totalorder %s28, 1
      %s475 = scalar_select %p474, %s28, 1
      %s476 = smul.addr %s475, 8
      %s477 = scalar_lea.vmem %s14, %s476
      %v478 = vld [vmem:[%s468] sm:$0xff]
      %479 = vadd.xlane.f32.xlu0 %v478
      %v480 = vpop.xlane.xlu0 %479
      %v481 = vrot.slane %v480, 4
      %v482 = vadd.f32 %v480, %v481
      %v483 = vrot.slane %v482, 2
      %v484 = vadd.f32 %v482, %v483
      %v485 = vrot.slane %v484, 1
      %v486 = vadd.f32 %v484, %v485
      %v487 = vmul.f32 %v478, %v478
      %488 = vadd.xlane.f32.xlu0 %v487
      %v489 = vpop.xlane.xlu0 %488
      %v490 = vrot.slane %v489, 4
      %v491 = vadd.f32 %v489, %v490
      %v492 = vrot.slane %v491, 2
      %v493 = vadd.f32 %v491, %v492
      %v494 = vrot.slane %v493, 1
      %v495 = vadd.f32 %v493, %v494
      %v496 = vrcp.pop 1024.0
      %v497 = vmul.f32 1024.0, %v496
      %v498 = vsub.f32 1.0, %v497
      %v499 = vmul.f32 %v496, %v498
      %v500 = vadd.f32 %v496, %v499
      %vm501 = vweird.f32 %v496
      %v502 = vsel %vm501, %v496, %v500
      %v503 = vmul.f32 %v486, %v502
      %v504 = vmul.f32 %v503, 1024.0
      %v505 = vmul.f32 %v504, %v503
      %v506 = vsub.f32 %v495, %v505
      %v507 = vrcp.pop 1023.0
      %v508 = vmul.f32 1023.0, %v507
      %v509 = vsub.f32 1.0, %v508
      %v510 = vmul.f32 %v507, %v509
      %v511 = vadd.f32 %v507, %v510
      %vm512 = vweird.f32 %v507
      %v513 = vsel %vm512, %v507, %v511
      %v514 = vmul.f32 %v506, %v513
      %v515 = vmax.f32 %v514, 0.0
      %v516 = vrsqrt.pop %v515
      %v517 = vmul.f32 %v516, %v515
      %v518 = vmul.f32 %v517, %v516
      %v519 = vmul.f32 0.5, %v518
      %v520 = vsub.f32 1.5, %v519
      %v521 = vmul.f32 %v516, %v520
      %v522 = vmul.f32 %v515, %v521
      %vm523 = vcmp.eq.f32.partialorder %v515, inf
      %v524 = vsel %vm523, %v515, %v522
      %vm525 = vcmp.eq.f32.partialorder %v515, 0.0
      %v526 = vand.u32 %v515, 2147483648
      %v527 = vsel %vm525, %v526, %v524
      %v528 = vadd.f32 %v527, 1e-08
      %v529 = vrcp.pop %v528
      %v530 = vmul.f32 %v478, %v529
      %v531 = vpack.c.bf16 %v530, %v530
      %v532 = vld [vmem:[%s1] sm:$0xf]
      %v533 = vld [vmem:[%s1 + $0x4] sm:$0xf]
      %v534 = vld [vmem:[%s1 + $0x8] sm:$0xf]
      %v535 = vld [vmem:[%s1 + $0xc] sm:$0xf]
      %v536 = vld [vmem:[%s1 + $0x10] sm:$0xf]
      %v537 = vld [vmem:[%s1 + $0x14] sm:$0xf]
      %v538 = vld [vmem:[%s1 + $0x18] sm:$0xf]
      %v539 = vld [vmem:[%s1 + $0x1c] sm:$0xf]
      %v540 = vld [vmem:[%s1 + $0x20] sm:$0xf]
      %v541 = vld [vmem:[%s1 + $0x24] sm:$0xf]
      %v542 = vld [vmem:[%s1 + $0x28] sm:$0xf]
      %v543 = vld [vmem:[%s1 + $0x2c] sm:$0xf]
      %v544 = vld [vmem:[%s1 + $0x30] sm:$0xf]
      %v545 = vld [vmem:[%s1 + $0x34] sm:$0xf]
      %v546 = vld [vmem:[%s1 + $0x38] sm:$0xf]
      %v547 = vld [vmem:[%s1 + $0x3c] sm:$0xf]
      %v548 = vld [vmem:[%s2] sm:$0x1]
      %v550 = vperm.slane %v548, 0
      %v568 = vunpack.c.l.b16 %v532
      %v569 = vunpack.c.l.b16 %v533
      %v570 = vunpack.c.l.b16 %v534
      %v571 = vunpack.c.l.b16 %v535
      %v572 = vunpack.c.l.b16 %v536
      %v573 = vunpack.c.l.b16 %v537
      %v574 = vunpack.c.l.b16 %v538
      %v575 = vunpack.c.l.b16 %v539
      %v576 = vunpack.c.l.b16 %v540
      %v577 = vunpack.c.l.b16 %v541
      %v578 = vunpack.c.l.b16 %v542
      %v579 = vunpack.c.l.b16 %v543
      %v580 = vunpack.c.l.b16 %v544
      %v581 = vunpack.c.l.b16 %v545
      %v582 = vunpack.c.l.b16 %v546
      %v583 = vunpack.c.l.b16 %v547
      %v584 = vpack.c.b16 %v569, %v568
      %v585 = vpack.c.b16 %v571, %v570
      %v586 = vpack.c.b16 %v573, %v572
      %v587 = vpack.c.b16 %v575, %v574
      %v588 = vpack.c.b16 %v577, %v576
      %v589 = vpack.c.b16 %v579, %v578
      %v590 = vpack.c.b16 %v581, %v580
      %v591 = vpack.c.b16 %v583, %v582
      %600 = vmatpush.bf16.msra.mxu0 %v591
      %601 = vmatpush.bf16.msra.mxu0 %v590
      %602 = vmatpush.bf16.msra.mxu0 %v589
      %603 = vmatpush.bf16.msra.mxu0 %v588
      %604 = vmatpush.bf16.msra.mxu0 %v587
      %605 = vmatpush.bf16.msra.mxu0 %v586
      %606 = vmatpush.bf16.msra.mxu0 %v585
      %607 = vmatpush.bf16.msra.mxu0 %v584
      %608 = vmatmul.bf16.gmra.mxu0 %v531
      %v609 = vpop.f32.mrf.mxu0
      %v610 = vadd.f32 %v550, %v609
      %v611 = vpop.f32.mrf.mxu0
      %612 = vdwg.mxu0
      %v613 = vmul.f32 %v610, 0.2
      %v614 = vmax.f32 %v610, %v613
      %v615 = vpack.c.bf16 %v614, %v614
      %v616 = vld [vmem:[%s3] sm:$0xf]
      %v617 = vld [vmem:[%s3 + $0x4] sm:$0xf]
      %v618 = vld [vmem:[%s3 + $0x8] sm:$0xf]
      %v619 = vld [vmem:[%s3 + $0xc] sm:$0xf]
      %v620 = vld [vmem:[%s3 + $0x10] sm:$0xf]
      %v621 = vld [vmem:[%s3 + $0x14] sm:$0xf]
      %v622 = vld [vmem:[%s3 + $0x18] sm:$0xf]
      %v623 = vld [vmem:[%s3 + $0x1c] sm:$0xf]
      %v624 = vld [vmem:[%s3 + $0x20] sm:$0xf]
      %v625 = vld [vmem:[%s3 + $0x24] sm:$0xf]
      %v626 = vld [vmem:[%s3 + $0x28] sm:$0xf]
      %v627 = vld [vmem:[%s3 + $0x2c] sm:$0xf]
      %v628 = vld [vmem:[%s3 + $0x30] sm:$0xf]
      %v629 = vld [vmem:[%s3 + $0x34] sm:$0xf]
      %v630 = vld [vmem:[%s3 + $0x38] sm:$0xf]
      %v631 = vld [vmem:[%s3 + $0x3c] sm:$0xf]
      %v632 = vld [vmem:[%s4] sm:$0x1]
      %v634 = vperm.slane %v632, 0
      %v652 = vunpack.c.l.b16 %v616
      %v653 = vunpack.c.l.b16 %v617
      %v654 = vunpack.c.l.b16 %v618
      %v655 = vunpack.c.l.b16 %v619
      %v656 = vunpack.c.l.b16 %v620
      %v657 = vunpack.c.l.b16 %v621
      %v658 = vunpack.c.l.b16 %v622
      %v659 = vunpack.c.l.b16 %v623
      %v660 = vunpack.c.l.b16 %v624
      %v661 = vunpack.c.l.b16 %v625
      %v662 = vunpack.c.l.b16 %v626
      %v663 = vunpack.c.l.b16 %v627
      %v664 = vunpack.c.l.b16 %v628
      %v665 = vunpack.c.l.b16 %v629
      %v666 = vunpack.c.l.b16 %v630
      %v667 = vunpack.c.l.b16 %v631
      %v668 = vpack.c.b16 %v653, %v652
      %v669 = vpack.c.b16 %v655, %v654
      %v670 = vpack.c.b16 %v657, %v656
      %v671 = vpack.c.b16 %v659, %v658
      %v672 = vpack.c.b16 %v661, %v660
      %v673 = vpack.c.b16 %v663, %v662
      %v674 = vpack.c.b16 %v665, %v664
      %v675 = vpack.c.b16 %v667, %v666
      %684 = vmatpush.bf16.msra.mxu0 %v675
      %685 = vmatpush.bf16.msra.mxu0 %v674
      %686 = vmatpush.bf16.msra.mxu0 %v673
      %687 = vmatpush.bf16.msra.mxu0 %v672
      %688 = vmatpush.bf16.msra.mxu0 %v671
      %689 = vmatpush.bf16.msra.mxu0 %v670
      %690 = vmatpush.bf16.msra.mxu0 %v669
      %691 = vmatpush.bf16.msra.mxu0 %v668
      %692 = vmatmul.bf16.gmra.mxu0 %v615
      %v693 = vpop.f32.mrf.mxu0
      %v694 = vadd.f32 %v634, %v693
      %v695 = vpop.f32.mrf.mxu0
      %696 = vdwg.mxu0
      %v697 = vmul.f32 %v694, 0.2
      %v698 = vmax.f32 %v694, %v697
      %v699 = vpack.c.bf16 %v698, %v698
      %v700 = vld [vmem:[%s5] sm:$0xff]
      %v701 = vld [vmem:[%s5 + $0x8] sm:$0xff]
      %v702 = vld [vmem:[%s5 + $0x10] sm:$0xff]
      %v703 = vld [vmem:[%s5 + $0x18] sm:$0xff]
      %v704 = vld [vmem:[%s5 + $0x20] sm:$0xff]
      %v705 = vld [vmem:[%s5 + $0x28] sm:$0xff]
      %v706 = vld [vmem:[%s5 + $0x30] sm:$0xff]
      %v707 = vld [vmem:[%s5 + $0x38] sm:$0xff]
      %v708 = vld [vmem:[%s5 + $0x40] sm:$0xff]
      %v709 = vld [vmem:[%s5 + $0x48] sm:$0xff]
      %v710 = vld [vmem:[%s5 + $0x50] sm:$0xff]
      %v711 = vld [vmem:[%s5 + $0x58] sm:$0xff]
      %v712 = vld [vmem:[%s5 + $0x60] sm:$0xff]
      %v713 = vld [vmem:[%s5 + $0x68] sm:$0xff]
      %v714 = vld [vmem:[%s5 + $0x70] sm:$0xff]
      %v715 = vld [vmem:[%s5 + $0x78] sm:$0xff]
      %v716 = vld [vmem:[%s6] sm:$0x3]
      %v718 = vperm.slane %v716, 0
      %v719 = vperm.slane %v716, 1
      %v738 = vunpack.c.l.b16 %v700
      %v739 = vunpack.c.h.b16 %v700
      %v740 = vunpack.c.l.b16 %v701
      %v741 = vunpack.c.h.b16 %v701
      %v742 = vunpack.c.l.b16 %v702
      %v743 = vunpack.c.h.b16 %v702
      %v744 = vunpack.c.l.b16 %v703
      %v745 = vunpack.c.h.b16 %v703
      %v746 = vunpack.c.l.b16 %v704
      %v747 = vunpack.c.h.b16 %v704
      %v748 = vunpack.c.l.b16 %v705
      %v749 = vunpack.c.h.b16 %v705
      %v750 = vunpack.c.l.b16 %v706
      %v751 = vunpack.c.h.b16 %v706
      %v752 = vunpack.c.l.b16 %v707
      %v753 = vunpack.c.h.b16 %v707
      %v754 = vunpack.c.l.b16 %v708
      %v755 = vunpack.c.h.b16 %v708
      %v756 = vunpack.c.l.b16 %v709
      %v757 = vunpack.c.h.b16 %v709
      %v758 = vunpack.c.l.b16 %v710
      %v759 = vunpack.c.h.b16 %v710
      %v760 = vunpack.c.l.b16 %v711
      %v761 = vunpack.c.h.b16 %v711
      %v762 = vunpack.c.l.b16 %v712
      %v763 = vunpack.c.h.b16 %v712
      %v764 = vunpack.c.l.b16 %v713
      %v765 = vunpack.c.h.b16 %v713
      %v766 = vunpack.c.l.b16 %v714
      %v767 = vunpack.c.h.b16 %v714
      %v768 = vunpack.c.l.b16 %v715
      %v769 = vunpack.c.h.b16 %v715
      %v770 = vpack.c.b16 %v740, %v738
      %v771 = vpack.c.b16 %v741, %v739
      %v772 = vpack.c.b16 %v744, %v742
      %v773 = vpack.c.b16 %v745, %v743
      %v774 = vpack.c.b16 %v748, %v746
      %v775 = vpack.c.b16 %v749, %v747
      %v776 = vpack.c.b16 %v752, %v750
      %v777 = vpack.c.b16 %v753, %v751
      %v778 = vpack.c.b16 %v756, %v754
      %v779 = vpack.c.b16 %v757, %v755
      %v780 = vpack.c.b16 %v760, %v758
      %v781 = vpack.c.b16 %v761, %v759
      %v782 = vpack.c.b16 %v764, %v762
      %v783 = vpack.c.b16 %v765, %v763
      %v784 = vpack.c.b16 %v768, %v766
      %v785 = vpack.c.b16 %v769, %v767
      %802 = vmatpush.bf16.msra.mxu0 %v784
      %803 = vmatpush.bf16.msra.mxu0 %v782
      %804 = vmatpush.bf16.msra.mxu0 %v780
      %805 = vmatpush.bf16.msra.mxu0 %v778
      %806 = vmatpush.bf16.msra.mxu0 %v776
      %807 = vmatpush.bf16.msra.mxu0 %v774
      %808 = vmatpush.bf16.msra.mxu0 %v772
      %809 = vmatpush.bf16.msra.mxu0 %v770
      %810 = vmatmul.bf16.gmra.mxu0 %v699
      %v811 = vpop.f32.mrf.mxu0
      %v812 = vadd.f32 %v718, %v811
      %v813 = vpop.f32.mrf.mxu0
      %814 = vdwg.mxu0
      %815 = vmatpush.bf16.msra.mxu0 %v785
      %816 = vmatpush.bf16.msra.mxu0 %v783
      %817 = vmatpush.bf16.msra.mxu0 %v781
      %818 = vmatpush.bf16.msra.mxu0 %v779
      %819 = vmatpush.bf16.msra.mxu0 %v777
      %820 = vmatpush.bf16.msra.mxu0 %v775
      %821 = vmatpush.bf16.msra.mxu0 %v773
      %822 = vmatpush.bf16.msra.mxu0 %v771
      %823 = vmatmul.bf16.gmra.mxu0 %v699
      %v824 = vpop.f32.mrf.mxu0
      %v825 = vadd.f32 %v719, %v824
      %v826 = vpop.f32.mrf.mxu0
      %827 = vdwg.mxu0
      %828 = vst [vmem:[%s473] sm:$0xff] %v812
      %829 = vst [vmem:[%s473 + $0x8] sm:$0xff] %v825
      %v830 = vpack.c.bf16 %v825, %v812
      %v831 = vld [vmem:[%s7] sm:$0xf]
      %v832 = vld [vmem:[%s7 + $0x4] sm:$0xf]
      %v833 = vld [vmem:[%s7 + $0x8] sm:$0xf]
      %v834 = vld [vmem:[%s7 + $0xc] sm:$0xf]
      %v835 = vld [vmem:[%s7 + $0x10] sm:$0xf]
      %v836 = vld [vmem:[%s7 + $0x14] sm:$0xf]
      %v837 = vld [vmem:[%s7 + $0x18] sm:$0xf]
      %v838 = vld [vmem:[%s7 + $0x1c] sm:$0xf]
      %v839 = vld [vmem:[%s7 + $0x20] sm:$0xf]
      %v840 = vld [vmem:[%s7 + $0x24] sm:$0xf]
      %v841 = vld [vmem:[%s7 + $0x28] sm:$0xf]
      %v842 = vld [vmem:[%s7 + $0x2c] sm:$0xf]
      %v843 = vld [vmem:[%s7 + $0x30] sm:$0xf]
      %v844 = vld [vmem:[%s7 + $0x34] sm:$0xf]
      %v845 = vld [vmem:[%s7 + $0x38] sm:$0xf]
      %v846 = vld [vmem:[%s7 + $0x3c] sm:$0xf]
      %v847 = vld [vmem:[%s8] sm:$0x1]
      %v849 = vperm.slane %v847, 0
      %v867 = vunpack.c.l.b16 %v831
      %v868 = vunpack.c.l.b16 %v832
      %v869 = vunpack.c.l.b16 %v833
      %v870 = vunpack.c.l.b16 %v834
      %v871 = vunpack.c.l.b16 %v835
      %v872 = vunpack.c.l.b16 %v836
      %v873 = vunpack.c.l.b16 %v837
      %v874 = vunpack.c.l.b16 %v838
      %v875 = vunpack.c.l.b16 %v839
      %v876 = vunpack.c.l.b16 %v840
      %v877 = vunpack.c.l.b16 %v841
      %v878 = vunpack.c.l.b16 %v842
      %v879 = vunpack.c.l.b16 %v843
      %v880 = vunpack.c.l.b16 %v844
      %v881 = vunpack.c.l.b16 %v845
      %v882 = vunpack.c.l.b16 %v846
      %v883 = vpack.c.b16 %v868, %v867
      %v884 = vpack.c.b16 %v870, %v869
      %v885 = vpack.c.b16 %v872, %v871
      %v886 = vpack.c.b16 %v874, %v873
      %v887 = vpack.c.b16 %v876, %v875
      %v888 = vpack.c.b16 %v878, %v877
      %v889 = vpack.c.b16 %v880, %v879
      %v890 = vpack.c.b16 %v882, %v881
      %899 = vmatpush.bf16.msra.mxu0 %v890
      %900 = vmatpush.bf16.msra.mxu0 %v889
      %901 = vmatpush.bf16.msra.mxu0 %v888
      %902 = vmatpush.bf16.msra.mxu0 %v887
      %903 = vmatpush.bf16.msra.mxu0 %v886
      %904 = vmatpush.bf16.msra.mxu0 %v885
      %905 = vmatpush.bf16.msra.mxu0 %v884
      %906 = vmatpush.bf16.msra.mxu0 %v883
      %907 = vmatmul.bf16.gmra.mxu0 %v830
      %v908 = vpop.f32.mrf.mxu0
      %v909 = vadd.f32 %v849, %v908
      %v910 = vpop.f32.mrf.mxu0
      %v911 = vadd.f32 %v849, %v910
      %912 = vdwg.mxu0
      %v913 = vmul.f32 %v909, 0.2
      %v914 = vmul.f32 %v911, 0.2
      %v915 = vmax.f32 %v909, %v913
      %v916 = vmax.f32 %v911, %v914
      %v917 = vpack.c.bf16 %v916, %v915
      %v918 = vld [vmem:[%s9] sm:$0xf]
      %v919 = vld [vmem:[%s9 + $0x4] sm:$0xf]
      %v920 = vld [vmem:[%s9 + $0x8] sm:$0xf]
      %v921 = vld [vmem:[%s9 + $0xc] sm:$0xf]
      %v922 = vld [vmem:[%s9 + $0x10] sm:$0xf]
      %v923 = vld [vmem:[%s9 + $0x14] sm:$0xf]
      %v924 = vld [vmem:[%s9 + $0x18] sm:$0xf]
      %v925 = vld [vmem:[%s9 + $0x1c] sm:$0xf]
      %v926 = vld [vmem:[%s9 + $0x20] sm:$0xf]
      %v927 = vld [vmem:[%s9 + $0x24] sm:$0xf]
      %v928 = vld [vmem:[%s9 + $0x28] sm:$0xf]
      %v929 = vld [vmem:[%s9 + $0x2c] sm:$0xf]
      %v930 = vld [vmem:[%s9 + $0x30] sm:$0xf]
      %v931 = vld [vmem:[%s9 + $0x34] sm:$0xf]
      %v932 = vld [vmem:[%s9 + $0x38] sm:$0xf]
      %v933 = vld [vmem:[%s9 + $0x3c] sm:$0xf]
      %v934 = vld [vmem:[%s10] sm:$0x1]
      %v936 = vperm.slane %v934, 0
      %v954 = vunpack.c.l.b16 %v918
      %v955 = vunpack.c.l.b16 %v919
      %v956 = vunpack.c.l.b16 %v920
      %v957 = vunpack.c.l.b16 %v921
      %v958 = vunpack.c.l.b16 %v922
      %v959 = vunpack.c.l.b16 %v923
      %v960 = vunpack.c.l.b16 %v924
      %v961 = vunpack.c.l.b16 %v925
      %v962 = vunpack.c.l.b16 %v926
      %v963 = vunpack.c.l.b16 %v927
      %v964 = vunpack.c.l.b16 %v928
      %v965 = vunpack.c.l.b16 %v929
      %v966 = vunpack.c.l.b16 %v930
      %v967 = vunpack.c.l.b16 %v931
      %v968 = vunpack.c.l.b16 %v932
      %v969 = vunpack.c.l.b16 %v933
      %v970 = vpack.c.b16 %v955, %v954
      %v971 = vpack.c.b16 %v957, %v956
      %v972 = vpack.c.b16 %v959, %v958
      %v973 = vpack.c.b16 %v961, %v960
      %v974 = vpack.c.b16 %v963, %v962
      %v975 = vpack.c.b16 %v965, %v964
      %v976 = vpack.c.b16 %v967, %v966
      %v977 = vpack.c.b16 %v969, %v968
      %986 = vmatpush.bf16.msra.mxu0 %v977
      %987 = vmatpush.bf16.msra.mxu0 %v976
      %988 = vmatpush.bf16.msra.mxu0 %v975
      %989 = vmatpush.bf16.msra.mxu0 %v974
      %990 = vmatpush.bf16.msra.mxu0 %v973
      %991 = vmatpush.bf16.msra.mxu0 %v972
      %992 = vmatpush.bf16.msra.mxu0 %v971
      %993 = vmatpush.bf16.msra.mxu0 %v970
      %994 = vmatmul.bf16.gmra.mxu0 %v917
      %v995 = vpop.f32.mrf.mxu0
      %v996 = vadd.f32 %v936, %v995
      %v997 = vpop.f32.mrf.mxu0
      %v998 = vadd.f32 %v936, %v997
      %999 = vdwg.mxu0
      %v1000 = vmul.f32 %v996, 0.2
      %v1001 = vmul.f32 %v998, 0.2
      %v1002 = vmax.f32 %v996, %v1000
      %v1003 = vmax.f32 %v998, %v1001
      %v1004 = vld [vmem:[%s11] sm:$0x1]
      %v1006 = vperm.slane %v1004, 0
      %v1008 = vmul.f32 %v1002, %v1006
      %v1009 = vmul.f32 %v1003, %v1006
      %1010 = vadd.xlane.f32.xlu0 %v1008
      %v1011 = vpop.xlane.xlu0 %1010
      %1012 = vadd.xlane.f32.xlu0 %v1009
      %v1013 = vpop.xlane.xlu0 %1012
      %v1014 = vld [vmem:[#allocation2] sm:$0x1]
      %v1016 = vperm.slane %v1014, 0
      %v1018 = vadd.f32 %v1011, %v1016
      %v1019 = vadd.f32 %v1013, %v1016
      %v1020 = vxor.u32 %v1018, 2147483648
      %v1021 = vxor.u32 %v1019, 2147483648
      %v1022 = vmul.f32 %v1020, 1.442695
      %v1023 = vpow.pop %v1022
      %v1024 = vmul.f32 %v1021, 1.442695
      %v1025 = vpow.pop %v1024
      %v1026 = vadd.f32 %v1023, 1.0
      %v1027 = vadd.f32 %v1025, 1.0
      %v1028 = vrcp.pop %v1026
      %v1029 = vmul.f32 %v1026, %v1028
      %v1030 = vsub.f32 1.0, %v1029
      %v1031 = vmul.f32 %v1028, %v1030
      %v1032 = vadd.f32 %v1028, %v1031
      %vm1033 = vweird.f32 %v1026
      %vm1034 = vweird.f32 %v1028
      %vm1035 = vmor %vm1033, %vm1034
      %v1036 = vsel %vm1035, %v1028, %v1032
      %v1037 = vand.u32 2147483647, %v1026
      %vm1038 = vcmp.eq.f32.partialorder %v1037, 8.507059e+37
      %v1039 = vand.u32 %v1026, 2147483648
      %v1040 = vor.u32 1.1754944e-38, %v1039
      %v1041 = vsel %vm1038, %v1040, %v1036
      %v1042 = vmul.f32 1.0, %v1041
      %v1043 = vrcp.pop %v1027
      %v1044 = vmul.f32 %v1027, %v1043
      %v1045 = vsub.f32 1.0, %v1044
      %v1046 = vmul.f32 %v1043, %v1045
      %v1047 = vadd.f32 %v1043, %v1046
      %vm1048 = vweird.f32 %v1027
      %vm1049 = vweird.f32 %v1043
      %vm1050 = vmor %vm1048, %vm1049
      %v1051 = vsel %vm1050, %v1043, %v1047
      %v1052 = vand.u32 2147483647, %v1027
      %vm1053 = vcmp.eq.f32.partialorder %v1052, 8.507059e+37
      %v1054 = vand.u32 %v1027, 2147483648
      %v1055 = vor.u32 1.1754944e-38, %v1054
      %v1056 = vsel %vm1053, %v1055, %v1051
      %v1057 = vmul.f32 1.0, %v1056
      %v1058 = vmul.f32 %v1042, 2.0
      %v1059 = vmul.f32 %v1057, 2.0
      %1061 = vrot.lane.b32.xlu0 %v1059, 1
      %v1062 = vpop.permute.xlu0 %1061
      %vm1064 = vcmask 7168
      %v1065 = vsel %vm1064, %v1058, %v1062
      %vm1066 = vcmask 15360
      %1067 = vst.msk [vmem:[%s477] sm:$0xff] %vm1066, %v1065
      %p1068 = scmp.lt.s32.totalorder %s28, 1
      %s1069 = scalar_select %p1068, %s28, 1
      %s1070 = smul.addr %s1069, 2
      %s1071 = smul.addr %s1070, 8
      %s1072 = scalar_lea.vmem %s13, %s1071
      %p1073 = scmp.lt.s32.totalorder %s28, 1
      %s1074 = scalar_select %p1073, %s28, 1
      %s1075 = smul.addr %s1074, 8
      %s1076 = scalar_lea.vmem %s14, %s1075
      // Predicated region
      $region73: #{branch_forward.1} parent=71 // pred_check
        %p1077 = pneg %p324
      $region74: #{branch_forward.1} parent=71 // pred_check_branch
        %1079 = sbr.rel (%p1077) target = $region76
      $region75: #{branch_forward.1} parent=71 // pred_region
        _
      $region76: #{branch_forward.1} parent=71 // pred_fallthru
        _
      // Predicated region
      $region77: #{branch_forward.1} parent=71 // pred_check
        %p1080 = pneg %p350
      $region78: #{branch_forward.1} parent=71 // pred_check_branch
        %1082 = sbr.rel (%p1080) target = $region80
      $region79: #{branch_forward.1} parent=71 // pred_region
        _
      $region80: #{branch_forward.1} parent=71 // pred_fallthru
        _
    $region72: #{branch_forward.1} parent=5 // pred_fallthru
      _
    %p1083 = scmp.le.s32.totalorder 2, %s23
    // Predicated region
    $region81: #{branch_forward.1} parent=5 // pred_check
      %p1084 = pneg %p1083
    $region82: #{branch_forward.1} parent=5 // pred_check_branch
      %1086 = sbr.rel (%p1084) target = $region84
    $region83: #{branch_forward.1} parent=5 // pred_region
      %s1087 = ssub.s32 %s23, 2
      // Predicated region
      $region85: #{branch_forward.1} parent=83 // pred_check
        %p1088 = pneg %p330
      $region86: #{branch_forward.1} parent=83 // pred_check_branch
        %1090 = sbr.rel (%p1088) target = $region88
      $region87: #{branch_forward.1} parent=83 // pred_region
        %p1091 = scmp.lt.s32.totalorder %s29, 1
        %s1092 = scalar_select %p1091, %s29, 1
        %s1093 = smul.addr %s1092, 2
        %s1094 = smul.addr %s1093, 8
        %s1095 = scalar_lea.vmem %s13, %s1094
      $region88: #{branch_forward.1} parent=83 // pred_fallthru
        _
      // Predicated region
      $region89: #{branch_forward.1} parent=83 // pred_check
        %p1096 = pneg %p356
      $region90: #{branch_forward.1} parent=83 // pred_check_branch
        %1098 = sbr.rel (%p1096) target = $region92
      $region91: #{branch_forward.1} parent=83 // pred_region
        %p1099 = scmp.lt.s32.totalorder %s29, 1
        %s1100 = scalar_select %p1099, %s29, 1
        %s1101 = smul.addr %s1100, 8
        %s1102 = scalar_lea.vmem %s14, %s1101
      $region92: #{branch_forward.1} parent=83 // pred_fallthru
        _
    $region84: #{branch_forward.1} parent=5 // pred_fallthru
      _
  $region6: #{branch_forward.1} parent=0 // loop_footer
    %s27 = sadd.s32 1, %s23
  $region7: #{branch_forward.1} parent=0 // loop_footer_branch
    %22 = sbr.rel target = $region3
  $region8: #{branch_forward.1} parent=0 // loop_exit
    _

</llo_original>
